<compile_context>
chip_gen: v7x
topology: tpu7x:2x2x1
jax: 0.10.0
libtpu: 0.0.40
codegen_flags: <defaults>
</compile_context>

<pallas_src>
import math

import jax
import jax.numpy as jnp
from jax.experimental import pallas as pl
from jax.experimental.pallas import tpu as pltpu


def _layer_scale_kernel(x_ref, gamma_ref, o_ref):
    # x_ref: (block_rows, lane_width) tile; gamma_ref: (1, lane_width) resident in VMEM.
    o_ref[...] = x_ref[...] * gamma_ref[...]


def _sublane_multiple(dtype) -> int:
    # f32 -> 8, bf16/f16 -> 16, int8/fp8 -> 32 (packed sublanes).
    itemsize = jnp.dtype(dtype).itemsize
    return max(8, 32 // itemsize)


def _tpu_generation_info():
    """Best-effort (is_v7x, is_v6, is_v5e, physical_vmem_bytes); safe fallbacks."""
    kind = ""
    try:
        kind = jax.devices()[0].device_kind.lower()
    except Exception:
        pass
    is_v7x = ("7x" in kind) or ("v7" in kind)
    is_v6 = "v6" in kind
    is_v5e = ("v5 lite" in kind) or ("v5lite" in kind) or ("v5e" in kind)
    phys_vmem = (64 << 20) if is_v7x else (128 << 20)
    try:
        info = pltpu.get_tpu_info()
        phys_vmem = int(getattr(info, "vmem_capacity_bytes", phys_vmem))
        if phys_vmem <= (80 << 20):  # only v7x-class parts have <= 64 MiB per TC
            is_v7x = True
    except Exception:
        pass
    return is_v7x, is_v6, is_v5e, phys_vmem


def _choose_lane_width(dim: int) -> int:
    """Smallest multiple of dim that is a multiple of 128 (capped), else dim."""
    if dim % 128 == 0:
        return dim
    lcm = math.lcm(dim, 128)
    if lcm <= 1024:
        return lcm
    # TODO(synk): dims whose lcm with 128 exceeds 1024 (e.g. dim=200) fall back to
    # lane_width=dim and take masked partial stores; not seen for real LayerScale dims.
    return dim


def layer_scale(x: jax.Array, gamma: jax.Array, *,
                target_block_bytes: int | None = None,
                donate_x: bool = False) -> jax.Array:
    """Computes x * gamma (gamma broadcast over the last dim) via Pallas on TPU."""
    orig_shape = x.shape
    dim = orig_shape[-1]
    assert gamma.shape == (dim,), f"gamma must be ({dim},), got {gamma.shape}"

    # Match dtypes so the multiply is single-pass on the VPU and the store needs no cast.
    gamma = gamma.astype(x.dtype)

    itemsize = jnp.dtype(x.dtype).itemsize
    total = x.size

    is_v7x, is_v6, is_v5e, phys_vmem = _tpu_generation_info()
    if target_block_bytes is None:
        # v7x (3.2 TB/s HBM) and v6e: 6 MiB blocks keep per-step overhead at ~5%;
        # v5e / unknown: 3 MiB stays inside the 16 MiB scoped-VMEM default.
        target_block_bytes = (6 << 20) if (is_v7x or is_v6) else (3 << 20)

    # ---- Lane-dense repack ---------------------------------------------------------
    lane_width = _choose_lane_width(dim)
    fold = lane_width // dim
    gamma_row = jnp.tile(gamma, fold).reshape(1, lane_width)

    rows = pl.cdiv(total, lane_width)
    padded_total = rows * lane_width
    x_flat = x.reshape(-1)
    if padded_total != total:
        # Tiny zero-pad (< lane_width elements logically, one XLA pad) instead of the
        # masked sub-128-lane fallback; zeros * gamma are discarded by the final slice.
        x_flat = jnp.pad(x_flat, (0, padded_total - total))
    x2d = x_flat.reshape(rows, lane_width)

    # ---- Row-block sizing ----------------------------------------------------------
    sub = _sublane_multiple(x.dtype)
    row_bytes = lane_width * itemsize
    br = max(sub, (target_block_bytes // row_bytes) // sub * sub)

    total_bytes = rows * row_bytes
    if total_bytes > (512 << 10):
        # Keep enough grid steps: >=8 on v7x so both TensorCores get work, >=2 elsewhere
        # so the double-buffered pipeline always has a DMA to overlap with compute.
        min_steps = 8 if is_v7x else 2
        cap = (rows // min_steps) // sub * sub
        if cap >= sub:
            br = min(br, cap)
    if br >= rows:
        br = rows  # full-extent block (always legal regardless of (8,128) divisibility)

    grid = (pl.cdiv(rows, br),)  # ragged last block handled by Pallas masking

    # ---- Scoped-VMEM limit (generation-aware; never set below the platform default) --
    block_bytes = br * row_bytes
    vmem_needed = 4 * block_bytes + 2 * row_bytes + (1 << 20)  # 2x in + 2x out + gamma + headroom
    scoped_default = (32 << 20) if (is_v7x or is_v6) else (16 << 20)
    cp_kwargs = dict(dimension_semantics=("parallel",))
    if vmem_needed > scoped_default:
        phys_cap = phys_vmem * 3 // 4
        cp_kwargs["vmem_limit_bytes"] = int(min(max(vmem_needed, scoped_default), phys_cap))

    call_kwargs = {}
    if donate_x:
        # Mirrors the PyTorch module's inplace=True: reuse x's HBM buffer for the output.
        call_kwargs["input_output_aliases"] = {0: 0}

    out2d = pl.pallas_call(
        _layer_scale_kernel,
        out_shape=jax.ShapeDtypeStruct((rows, lane_width), x.dtype),
        grid_spec=pltpu.PrefetchScalarGridSpec(
            num_scalar_prefetch=0,
            grid=grid,
            in_specs=[
                pl.BlockSpec((br, lane_width), lambda i: (i, 0)),
                # gamma: whole (tiny) array kept resident in VMEM, no per-step DMA.
                pl.BlockSpec(memory_space=pltpu.MemorySpace.VMEM),
            ],
            out_specs=pl.BlockSpec((br, lane_width), lambda i: (i, 0)),
        ),
        compiler_params=pltpu.CompilerParams(**cp_kwargs),
        **call_kwargs,
    )(x2d, gamma_row)

    out_flat = out2d.reshape(-1)
    if padded_total != total:
        out_flat = out_flat[:total]
    return out_flat.reshape(orig_shape)


if __name__ == "__main__":
    # Module config: LayerScale(dim=32, init_values=1e-5).
    # Note: the `inplace` flag in the PyTorch module does not change forward semantics.
    dim = 32
    init_values = 1e-5
    key = jax.random.PRNGKey(0)
    gamma = jnp.full((dim,), init_values, dtype=jnp.float32)

    # --- Test 1: small f32 input, (batch, seq, dim) layout; single full-extent block.
    x = jax.random.normal(key, (2, 8, dim), dtype=jnp.float32)
    out = jax.block_until_ready(layer_scale(x, gamma))
    ref = x * gamma
    assert out.shape == x.shape and out.dtype == x.dtype
    assert jnp.allclose(out, ref, atol=1e-7, rtol=1e-6)

    # --- Test 2: bf16 input with f32 gamma; 111 logical rows (not a multiple of the
    #     fold factor 4) -> exercises the lane-dense zero-pad path (no masked fallback).
    k2 = jax.random.fold_in(key, 1)
    xb = jax.random.normal(k2, (3, 37, dim), dtype=jnp.bfloat16)
    outb = jax.block_until_ready(layer_scale(xb, gamma))
    refb = xb * gamma.astype(jnp.bfloat16)
    assert outb.shape == xb.shape and outb.dtype == xb.dtype
    assert jnp.allclose(outb.astype(jnp.float32), refb.astype(jnp.float32),
                        atol=1e-6, rtol=2e-2)

    # --- Test 3: multi-step grid with a ragged last block (small block budget forces it).
    k3 = jax.random.fold_in(key, 2)
    xr = jax.random.normal(k3, (1, 1000, dim), dtype=jnp.float32)
    outr = jax.block_until_ready(layer_scale(xr, gamma, target_block_bytes=64 * 1024))
    refr = xr * gamma
    assert outr.shape == xr.shape and outr.dtype == xr.dtype
    assert jnp.allclose(outr, refr, atol=1e-7, rtol=1e-6)

    # --- Test 4: >512 KiB tensor -> min-grid-steps cap + default block sizing path,
    #     plus the donate_x (inplace-style, input_output_aliases) variant.
    k4 = jax.random.fold_in(key, 3)
    xl = jax.random.normal(k4, (1, 8192, dim), dtype=jnp.float32)
    refl = xl * gamma
    outl = jax.block_until_ready(layer_scale(xl, gamma, donate_x=True))
    assert outl.shape == xl.shape and outl.dtype == xl.dtype
    assert jnp.allclose(outl, refl, atol=1e-7, rtol=1e-6)

    print("KERNEL_OK")
</pallas_src>

<mosaic_0001>
module attributes {stable_mosaic.version = 11 : i64} {
  func.func @_layer_scale_kernel(%arg0: i32, %arg1: memref<4x128xf32, #tpu.memory_space<vmem>>, %arg2: memref<1x128xf32, #tpu.memory_space<vmem>>, %arg3: memref<4x128xf32, #tpu.memory_space<vmem>>) attributes {dimension_semantics = [#tpu.dimension_semantics<parallel>], iteration_bounds = array<i64: 1>, scalar_prefetch = 0 : i64, scratch_operands = 0 : i64, tpu.core_type = #tpu.core_type<tc>, window_params = [{transform_indices = @transform_0, window_bounds = array<i64: 4, 128>}, {pipeline_mode = #tpu.pipeline_mode<synchronous>, transform_indices = @transform_1, window_bounds = array<i64: 1, 128>}, {transform_indices = @transform_2, window_bounds = array<i64: 4, 128>}]} {
    %c0 = arith.constant 0 : index
    %c0_0 = arith.constant 0 : index
    %0 = vector.load %arg1[%c0, %c0_0] : memref<4x128xf32, #tpu.memory_space<vmem>>, vector<4x128xf32>
    %c0_1 = arith.constant 0 : index
    %c0_2 = arith.constant 0 : index
    %1 = vector.load %arg2[%c0_1, %c0_2] : memref<1x128xf32, #tpu.memory_space<vmem>>, vector<1x128xf32>
    %2 = vector.broadcast %1 : vector<1x128xf32> to vector<4x128xf32>
    %3 = arith.mulf %0, %2 : vector<4x128xf32>
    %c0_3 = arith.constant 0 : index
    %c0_4 = arith.constant 0 : index
    %4 = vector.load %arg3[%c0_3, %c0_4] : memref<4x128xf32, #tpu.memory_space<vmem>>, vector<4x128xf32>
    tpu.vector_store %arg3[%c0_3, %c0_4], %3 {strides = array<i32>} : memref<4x128xf32, #tpu.memory_space<vmem>>, vector<4x128xf32>,
    return
  }
  func.func @transform_0(%arg0: i32) -> (i32, i32) {
    %c0_i32 = arith.constant 0 : i32
    %c0_i32_0 = arith.constant 0 : i32
    return %arg0, %c0_i32 : i32, i32
  }
  func.func @transform_1(%arg0: i32) -> (i32, i32) {
    %c0_i32 = arith.constant 0 : i32
    %c0_i32_0 = arith.constant 0 : i32
    %c0_i32_1 = arith.constant 0 : i32
    return %c0_i32, %c0_i32_0 : i32, i32
  }
  func.func @transform_2(%arg0: i32) -> (i32, i32) {
    %c0_i32 = arith.constant 0 : i32
    %c0_i32_0 = arith.constant 0 : i32
    return %arg0, %c0_i32 : i32, i32
  }
}

</mosaic_0001>

<llo_original>
// kernel: tpu_custom_call.1
$region0: #{tpu_custom_call.1}
  #allocation0 [shape = 'u32[]', space=smem, size = 0x4, offset = 0x4, fixed_abs, tag = 'smem constant byte address 0x4 - core index']
  #allocation1 [shape = 'u32[144,128]{1,0:T(1,128)}', space=vmem, size = 0x12000, scoped, tag = 'internal scratch']
  %s0 = inlined_call_operand.hbm [shape: f32[4,128], index: 0, kind: input, shape index: {}]
  %s1 = inlined_call_operand.vmem [shape: f32[1,128], index: 1, kind: input, shape index: {}]
  %s2 = inlined_call_operand.hbm [shape: f32[4,128], index: 2, kind: output, shape index: {}]
  %s3 = sld [smem:[#allocation0]]
  $region22: #{tpu_custom_call.1} parent=0
    _
  %s5 = ssub.s32 1, %s3
  %s6 = scalar_select 0, %s5, %s3
  $region1: #{tpu_custom_call.1} parent=0
    #allocation2 [shape = 'u8[2048]{0}', space=vmem, size = 0x800, scoped, tag = 'input window, operand 0, single buffered']
    #allocation3 [shape = 's32[1]{0}', space=sflag, size = 0x4, scoped, tag = 'scoped memory for tpu_custom_call.1']
    #allocation4 [shape = 's32[1]{0}', space=sflag, size = 0x4, scoped, tag = 'scoped memory for tpu_custom_call.1']
    #allocation5 [shape = 'u8[2048]{0}', space=vmem, size = 0x800, scoped, tag = 'output window, operand 0, single buffered']
    %7 = vsyncpa [#allocation3], 0
    %8 = vsyncpa [#allocation4], 0
    // Predicated region
    $region2: #{tpu_custom_call.1} parent=1 // pred_check
      _
    $region3: #{tpu_custom_call.1} parent=1 // pred_check_branch
      %10 = sbr.rel (0) target = $region5
    $region4: #{tpu_custom_call.1} parent=1 // pred_region
      %s12 = ssub.s32 64, 64
      %13 = vsyncadd [#allocation3], %s12
      %s15 = sshll.u32 [#allocation2], 4
      %s16 = int_to_ptr.vmem [resolvable:$true] %s15
      %18 = dma.hbm_to_vmem [thread:$0]  %s0, 64, %s16, [#allocation3]
    $region5: #{tpu_custom_call.1} parent=1 // pred_fallthru
      _
    // Predicated region
    $region6: #{tpu_custom_call.1} parent=1 // pred_check
      _
    $region7: #{tpu_custom_call.1} parent=1 // pred_check_branch
      %20 = sbr.rel (0) target = $region9
    $region8: #{tpu_custom_call.1} parent=1 // pred_region
      _
    $region9: #{tpu_custom_call.1} parent=1 // pred_fallthru
      _
    // Predicated region
    $region10: #{tpu_custom_call.1} parent=1 // pred_check
      _
    $region11: #{tpu_custom_call.1} parent=1 // pred_check_branch
      %22 = sbr.rel (0) target = $region13
    $region12: #{tpu_custom_call.1} parent=1 // pred_region
      %23 = dma.done [#allocation3], 64
    $region13: #{tpu_custom_call.1} parent=1 // pred_fallthru
      _
    %v24 = vld [vmem:[#allocation2] sm:$0xf]
    %v25 = vld [vmem:[%s1] sm:$0x1]
    %v27 = vlaneseq
    %v28 = vshrl.u32 %v27, 7
    %v29 = vsub.s32 0, %v28
    %v30 = vrot.slane %v25, %v29
    %v32 = vmul.f32 %v24, %v30
    %33 = vst [vmem:[#allocation5] sm:$0xf] %v32
    // Predicated region
    $region14: #{tpu_custom_call.1} parent=1 // pred_check
      _
    $region15: #{tpu_custom_call.1} parent=1 // pred_check_branch
      %35 = sbr.rel (0) target = $region17
    $region16: #{tpu_custom_call.1} parent=1 // pred_region
      %s37 = ssub.s32 64, 64
      %38 = vsyncadd [#allocation4], %s37
      %s40 = sshll.u32 [#allocation5], 4
      %s41 = int_to_ptr.vmem [resolvable:$true] %s40
      %43 = dma.vmem_to_hbm [thread:$0]  %s41, 64, %s2, [#allocation4]
    $region17: #{tpu_custom_call.1} parent=1 // pred_fallthru
      _
    // Predicated region
    $region18: #{tpu_custom_call.1} parent=1 // pred_check
      _
    $region19: #{tpu_custom_call.1} parent=1 // pred_check_branch
      %45 = sbr.rel (0) target = $region21
    $region20: #{tpu_custom_call.1} parent=1 // pred_region
      %46 = dma.done [#allocation4], 64
    $region21: #{tpu_custom_call.1} parent=1 // pred_fallthru
      _
    %47 = vsyncpa [#allocation3], 1
    %48 = vsyncpa [#allocation4], 1

</llo_original>
